<compile_context>
chip_gen: v5e
topology: v5e:2x2
jax: 0.10.0
libtpu: 0.0.40
codegen_flags: <defaults>
</compile_context>

<pallas_src>
import functools

import jax
import jax.numpy as jnp
from jax.experimental import pallas as pl
from jax.experimental.pallas import tpu as pltpu

EPS = 1e-5


def _round_up(x, m):
    return ((x + m - 1) // m) * m


# ----------------------------------------------------------------------------
# Kernel
# ----------------------------------------------------------------------------
def _bn_normalize_onepass(h, inv_b):
    """(h - mean) * rsqrt(var + eps), train-mode (biased) stats, single pass."""
    s = jnp.sum(h, axis=0, keepdims=True)
    ss = jnp.sum(h * h, axis=0, keepdims=True)
    mean = s * inv_b
    var = jnp.maximum(ss * inv_b - mean * mean, 0.0)
    return (h - mean) * jax.lax.rsqrt(var + EPS)


def _make_actor_kernel(n_hidden, obs_dim, batch, act_limit):
    inv_b = 1.0 / float(batch)

    def kernel(x_ref, w_ref, v_ref, o_ref):
        # w_ref: (H+1, D, D) bf16  -> [W1 | W2..WH | W_out]
        # v_ref: (2H+1, D)   f32   -> [g_1, b_1, ..., g_H, b_H, bias_out]
        x = x_ref[...]

        # Input BatchNorm1d: gamma0 is folded into W1; beta0 (and every hidden
        # Linear bias) cancels exactly under the next train-mode BN, so only
        # the normalization runs here.
        h = _bn_normalize_onepass(x, inv_b)

        # Hidden blocks: Linear (no bias) -> BatchNorm1d -> ReLU
        for i in range(n_hidden):
            # Static slice: only the first obs_dim rows of W1 are meaningful.
            w = w_ref[0, 0:obs_dim, :] if i == 0 else w_ref[i]
            h = jnp.dot(h.astype(jnp.bfloat16), w,
                        preferred_element_type=jnp.float32)
            g = v_ref[2 * i:2 * i + 1, :]
            be = v_ref[2 * i + 1:2 * i + 2, :]
            h = _bn_normalize_onepass(h, inv_b) * g + be
            h = jnp.maximum(h, 0.0)

        # Output Linear -> Tanh -> act_limit scaling (lane-dense padded out).
        w_out = w_ref[n_hidden]
        b_out = v_ref[2 * n_hidden:2 * n_hidden + 1, :]
        out = jnp.dot(h.astype(jnp.bfloat16), w_out,
                      preferred_element_type=jnp.float32) + b_out
        o_ref[...] = (act_limit * jnp.tanh(out)).astype(o_ref.dtype)

    return kernel


# ----------------------------------------------------------------------------
# Parameter init (PyTorch-like shapes/semantics) and one-time packing
# ----------------------------------------------------------------------------
def init_actor_params(key, obs_dim, act_dim, hidden_sizes):
    """Flat param list mirroring the PyTorch module (weights stored (in,out)):
       bn0_gamma, bn0_beta,
       [W_i, b_i, bn_i_gamma, bn_i_beta] * H,
       W_out, b_out
    """
    sizes = [obs_dim] + list(hidden_sizes) + [act_dim]
    params = []

    key, k1, k2 = jax.random.split(key, 3)
    params.append(jax.random.normal(k1, (sizes[0],), jnp.float32) * 0.1 + 1.0)
    params.append(jax.random.normal(k2, (sizes[0],), jnp.float32) * 0.1)

    for i in range(len(sizes) - 2):
        fan_in, fan_out = sizes[i], sizes[i + 1]
        bound = 1.0 / float(fan_in) ** 0.5
        key, kw, kb, kg, kbe = jax.random.split(key, 5)
        params.append(
            jax.random.uniform(kw, (fan_in, fan_out), jnp.float32, -bound, bound))
        params.append(
            jax.random.uniform(kb, (fan_out,), jnp.float32, -bound, bound))
        params.append(
            jax.random.normal(kg, (fan_out,), jnp.float32) * 0.1 + 1.0)
        params.append(jax.random.normal(kbe, (fan_out,), jnp.float32) * 0.1)

    fan_in = sizes[-2]
    bound = 1.0 / float(fan_in) ** 0.5
    key, kw, kb = jax.random.split(key, 3)
    params.append(
        jax.random.uniform(kw, (fan_in, act_dim), jnp.float32, -bound, bound))
    params.append(jax.random.uniform(kb, (act_dim,), jnp.float32, -bound, bound))
    return params


def pack_actor_params(params, obs_dim, act_dim, hidden_sizes):
    """One-time (host-side) packing into two slabs:
         w_slab: (H+1, D, D) bf16  -- W1 (gamma0 folded), W2..WH, W_out
         vecs  : (2H+1, D)   f32   -- [gamma_i, beta_i] per hidden layer, b_out
       Hidden Linear biases and beta0 are dropped (exactly cancelled by the
       mean subtraction of the following train-mode BatchNorm).
    """
    H = len(hidden_sizes)
    assert H >= 1, "need at least one hidden layer"
    D = _round_up(max(list(hidden_sizes) + [act_dim, 1]), 128)

    it = iter(params)
    g0, _b0 = next(it), next(it)                      # beta0 cancels under BN1
    w1, _b1, g1, be1 = next(it), next(it), next(it), next(it)  # b1 cancels

    w1f = g0[:, None] * w1                            # fold gamma0 into W1

    def pad_vec(v):
        return jnp.pad(v, (0, D - v.shape[0]))

    def pad_mat(w):
        return jnp.pad(w, ((0, D - w.shape[0]), (0, D - w.shape[1])))

    mats = [pad_mat(w1f)]                             # (D, D); rows >= obs_dim are 0
    vec_rows = [pad_vec(g1), pad_vec(be1)]
    for _ in range(1, H):
        w, _b, g, be = next(it), next(it), next(it), next(it)  # b dropped
        mats.append(pad_mat(w))
        vec_rows += [pad_vec(g), pad_vec(be)]
    wf, bf = next(it), next(it)
    mats.append(pad_mat(wf))
    vec_rows.append(pad_vec(bf))

    w_slab = jnp.stack(mats).astype(jnp.bfloat16)     # (H+1, D, D) bf16
    vecs = jnp.stack(vec_rows).astype(jnp.float32)    # (2H+1, D)  f32
    return w_slab, vecs


# ----------------------------------------------------------------------------
# Forward
# ----------------------------------------------------------------------------
@functools.partial(jax.jit, static_argnames=("act_dim", "act_limit"))
def actor_forward(obs, w_slab, vecs, *, act_dim, act_limit):
    obs = obs.astype(jnp.float32)
    batch, obs_dim = obs.shape
    n_hidden = w_slab.shape[0] - 1
    d = w_slab.shape[-1]

    flops = 2 * batch * (obs_dim * d + n_hidden * d * d)
    transcendentals = batch * d + (n_hidden + 1) * d
    bytes_accessed = (4 * obs.size + 2 * w_slab.size + 4 * vecs.size
                      + 4 * batch * d)

    kernel = _make_actor_kernel(n_hidden, obs_dim, batch, act_limit)
    out_padded = pl.pallas_call(
        kernel,
        out_shape=jax.ShapeDtypeStruct((batch, d), jnp.float32),
        in_specs=[pl.BlockSpec(memory_space=pltpu.MemorySpace.VMEM)] * 3,
        out_specs=pl.BlockSpec(memory_space=pltpu.MemorySpace.VMEM),
        cost_estimate=pl.CostEstimate(
            flops=int(flops),
            transcendentals=int(transcendentals),
            bytes_accessed=int(bytes_accessed)),
    )(obs, w_slab, vecs)
    return out_padded[:, :act_dim]


# ----------------------------------------------------------------------------
# Pure-JAX reference (unfolded f32 params, two-pass BN) for validation
# ----------------------------------------------------------------------------
def _bn_ref(h, gamma, beta):
    mean = jnp.mean(h, axis=0, keepdims=True)
    var = jnp.mean((h - mean) ** 2, axis=0, keepdims=True)
    return (h - mean) * jax.lax.rsqrt(var + EPS) * gamma + beta


def actor_reference(obs, params, act_limit):
    x = obs.astype(jnp.float32)
    it = iter(params)
    h = _bn_ref(x, next(it), next(it))
    n_hidden = (len(params) - 4) // 4
    for _ in range(n_hidden):
        w, b, g, be = next(it), next(it), next(it), next(it)
        h = jnp.maximum(_bn_ref(h @ w + b, g, be), 0.0)
    wf, bf = next(it), next(it)
    return act_limit * jnp.tanh(h @ wf + bf)


if __name__ == "__main__":
    obs_dim, act_dim = 24, 8
    hidden_sizes = (32, 32)
    act_limit = 2.0
    batch = 8

    key = jax.random.PRNGKey(0)
    k_obs, k_par = jax.random.split(key)
    obs = jax.random.normal(k_obs, (batch, obs_dim), jnp.float32)
    params = init_actor_params(k_par, obs_dim, act_dim, hidden_sizes)

    # One-time packing (outside the per-call path).
    w_slab, vecs = pack_actor_params(params, obs_dim, act_dim, hidden_sizes)

    out = actor_forward(obs, w_slab, vecs, act_dim=act_dim, act_limit=act_limit)
    jax.block_until_ready(out)

    ref = actor_reference(obs, params, act_limit)
    assert out.shape == (batch, act_dim), out.shape
    # bf16 weight storage (MXU-native path) => tolerance sized for bf16.
    max_err = float(jnp.max(jnp.abs(out - ref)))
    assert max_err < 5e-2, max_err

    print("KERNEL_OK")
</pallas_src>

<mosaic_0001>
module attributes {stable_mosaic.version = 11 : i64} {
  func.func @kernel(%arg0: memref<8x24xf32, #tpu.memory_space<vmem>>, %arg1: memref<3x128x128xbf16, #tpu.memory_space<vmem>>, %arg2: memref<5x128xf32, #tpu.memory_space<vmem>>, %arg3: memref<8x128xf32, #tpu.memory_space<vmem>>) attributes {dimension_semantics = [], scalar_prefetch = 0 : i64, scratch_operands = 0 : i64, tpu.core_type = #tpu.core_type<tc>} {
    %c0 = arith.constant 0 : index
    %c0_0 = arith.constant 0 : index
    %0 = vector.load %arg0[%c0, %c0_0] : memref<8x24xf32, #tpu.memory_space<vmem>>, vector<8x24xf32>
    %cst = arith.constant dense<0.000000e+00> : vector<24xf32>
    %1 = vector.multi_reduction <add>, %0, %cst [0] : vector<8x24xf32> to vector<24xf32>
    %2 = vector.shape_cast %1 : vector<24xf32> to vector<1x24xf32>
    %3 = arith.mulf %0, %0 : vector<8x24xf32>
    %cst_1 = arith.constant dense<0.000000e+00> : vector<24xf32>
    %4 = vector.multi_reduction <add>, %3, %cst_1 [0] : vector<8x24xf32> to vector<24xf32>
    %5 = vector.shape_cast %4 : vector<24xf32> to vector<1x24xf32>
    %cst_2 = arith.constant 1.250000e-01 : f32
    %6 = vector.broadcast %cst_2 : f32 to vector<1x24xf32>
    %7 = arith.mulf %2, %6 : vector<1x24xf32>
    %cst_3 = arith.constant 1.250000e-01 : f32
    %8 = vector.broadcast %cst_3 : f32 to vector<1x24xf32>
    %9 = arith.mulf %5, %8 : vector<1x24xf32>
    %10 = arith.mulf %7, %7 : vector<1x24xf32>
    %11 = arith.subf %9, %10 : vector<1x24xf32>
    %cst_4 = arith.constant 0.000000e+00 : f32
    %12 = vector.broadcast %cst_4 : f32 to vector<1x24xf32>
    %13 = arith.maximumf %11, %12 : vector<1x24xf32>
    %14 = vector.broadcast %7 : vector<1x24xf32> to vector<8x24xf32>
    %15 = arith.subf %0, %14 : vector<8x24xf32>
    %cst_5 = arith.constant 9.99999974E-6 : f32
    %16 = vector.broadcast %cst_5 : f32 to vector<1x24xf32>
    %17 = arith.addf %13, %16 : vector<1x24xf32>
    %18 = math.rsqrt %17 : vector<1x24xf32>
    %19 = vector.broadcast %18 : vector<1x24xf32> to vector<8x24xf32>
    %20 = arith.mulf %15, %19 : vector<8x24xf32>
    %c0_6 = arith.constant 0 : index
    %c0_7 = arith.constant 0 : index
    %c0_8 = arith.constant 0 : index
    %21 = vector.load %arg1[%c0_6, %c0_7, %c0_8] : memref<3x128x128xbf16, #tpu.memory_space<vmem>>, vector<1x24x128xbf16>
    %22 = vector.shape_cast %21 : vector<1x24x128xbf16> to vector<24x128xbf16>
    %23 = arith.truncf %20 : vector<8x24xf32> to vector<8x24xbf16>
    %cst_9 = arith.constant dense<0.000000e+00> : vector<8x128xf32>
    %24 = tpu.matmul %23, %22, %cst_9 {dimension_numbers = #tpu.dot_dimension_numbers<[1], [0], [0], [1], [0, 0, 1, 1], [], []>} : vector<8x24xbf16>, vector<24x128xbf16>, vector<8x128xf32> -> vector<8x128xf32>
    %c0_10 = arith.constant 0 : index
    %c0_11 = arith.constant 0 : index
    %25 = vector.load %arg2[%c0_10, %c0_11] : memref<5x128xf32, #tpu.memory_space<vmem>>, vector<1x128xf32>
    %c1 = arith.constant 1 : index
    %c0_12 = arith.constant 0 : index
    %26 = vector.load %arg2[%c1, %c0_12] : memref<5x128xf32, #tpu.memory_space<vmem>>, vector<1x128xf32>
    %cst_13 = arith.constant dense<0.000000e+00> : vector<128xf32>
    %27 = vector.multi_reduction <add>, %24, %cst_13 [0] : vector<8x128xf32> to vector<128xf32>
    %28 = vector.shape_cast %27 : vector<128xf32> to vector<1x128xf32>
    %29 = arith.mulf %24, %24 : vector<8x128xf32>
    %cst_14 = arith.constant dense<0.000000e+00> : vector<128xf32>
    %30 = vector.multi_reduction <add>, %29, %cst_14 [0] : vector<8x128xf32> to vector<128xf32>
    %31 = vector.shape_cast %30 : vector<128xf32> to vector<1x128xf32>
    %cst_15 = arith.constant 1.250000e-01 : f32
    %32 = vector.broadcast %cst_15 : f32 to vector<1x128xf32>
    %33 = arith.mulf %28, %32 : vector<1x128xf32>
    %cst_16 = arith.constant 1.250000e-01 : f32
    %34 = vector.broadcast %cst_16 : f32 to vector<1x128xf32>
    %35 = arith.mulf %31, %34 : vector<1x128xf32>
    %36 = arith.mulf %33, %33 : vector<1x128xf32>
    %37 = arith.subf %35, %36 : vector<1x128xf32>
    %cst_17 = arith.constant 0.000000e+00 : f32
    %38 = vector.broadcast %cst_17 : f32 to vector<1x128xf32>
    %39 = arith.maximumf %37, %38 : vector<1x128xf32>
    %40 = vector.broadcast %33 : vector<1x128xf32> to vector<8x128xf32>
    %41 = arith.subf %24, %40 : vector<8x128xf32>
    %cst_18 = arith.constant 9.99999974E-6 : f32
    %42 = vector.broadcast %cst_18 : f32 to vector<1x128xf32>
    %43 = arith.addf %39, %42 : vector<1x128xf32>
    %44 = math.rsqrt %43 : vector<1x128xf32>
    %45 = vector.broadcast %44 : vector<1x128xf32> to vector<8x128xf32>
    %46 = arith.mulf %41, %45 : vector<8x128xf32>
    %47 = vector.broadcast %25 : vector<1x128xf32> to vector<8x128xf32>
    %48 = arith.mulf %46, %47 : vector<8x128xf32>
    %49 = vector.broadcast %26 : vector<1x128xf32> to vector<8x128xf32>
    %50 = arith.addf %48, %49 : vector<8x128xf32>
    %cst_19 = arith.constant 0.000000e+00 : f32
    %51 = vector.broadcast %cst_19 : f32 to vector<8x128xf32>
    %52 = arith.maximumf %50, %51 : vector<8x128xf32>
    %c1_20 = arith.constant 1 : index
    %c0_21 = arith.constant 0 : index
    %c0_22 = arith.constant 0 : index
    %53 = vector.load %arg1[%c1_20, %c0_21, %c0_22] : memref<3x128x128xbf16, #tpu.memory_space<vmem>>, vector<1x128x128xbf16>
    %54 = vector.shape_cast %53 : vector<1x128x128xbf16> to vector<128x128xbf16>
    %55 = arith.truncf %52 : vector<8x128xf32> to vector<8x128xbf16>
    %cst_23 = arith.constant dense<0.000000e+00> : vector<8x128xf32>
    %56 = tpu.matmul %55, %54, %cst_23 {dimension_numbers = #tpu.dot_dimension_numbers<[1], [0], [0], [1], [0, 0, 1, 1], [], []>} : vector<8x128xbf16>, vector<128x128xbf16>, vector<8x128xf32> -> vector<8x128xf32>
    %c2 = arith.constant 2 : index
    %c0_24 = arith.constant 0 : index
    %57 = vector.load %arg2[%c2, %c0_24] : memref<5x128xf32, #tpu.memory_space<vmem>>, vector<1x128xf32>
    %c3 = arith.constant 3 : index
    %c0_25 = arith.constant 0 : index
    %58 = vector.load %arg2[%c3, %c0_25] : memref<5x128xf32, #tpu.memory_space<vmem>>, vector<1x128xf32>
    %cst_26 = arith.constant dense<0.000000e+00> : vector<128xf32>
    %59 = vector.multi_reduction <add>, %56, %cst_26 [0] : vector<8x128xf32> to vector<128xf32>
    %60 = vector.shape_cast %59 : vector<128xf32> to vector<1x128xf32>
    %61 = arith.mulf %56, %56 : vector<8x128xf32>
    %cst_27 = arith.constant dense<0.000000e+00> : vector<128xf32>
    %62 = vector.multi_reduction <add>, %61, %cst_27 [0] : vector<8x128xf32> to vector<128xf32>
    %63 = vector.shape_cast %62 : vector<128xf32> to vector<1x128xf32>
    %cst_28 = arith.constant 1.250000e-01 : f32
    %64 = vector.broadcast %cst_28 : f32 to vector<1x128xf32>
    %65 = arith.mulf %60, %64 : vector<1x128xf32>
    %cst_29 = arith.constant 1.250000e-01 : f32
    %66 = vector.broadcast %cst_29 : f32 to vector<1x128xf32>
    %67 = arith.mulf %63, %66 : vector<1x128xf32>
    %68 = arith.mulf %65, %65 : vector<1x128xf32>
    %69 = arith.subf %67, %68 : vector<1x128xf32>
    %cst_30 = arith.constant 0.000000e+00 : f32
    %70 = vector.broadcast %cst_30 : f32 to vector<1x128xf32>
    %71 = arith.maximumf %69, %70 : vector<1x128xf32>
    %72 = vector.broadcast %65 : vector<1x128xf32> to vector<8x128xf32>
    %73 = arith.subf %56, %72 : vector<8x128xf32>
    %cst_31 = arith.constant 9.99999974E-6 : f32
    %74 = vector.broadcast %cst_31 : f32 to vector<1x128xf32>
    %75 = arith.addf %71, %74 : vector<1x128xf32>
    %76 = math.rsqrt %75 : vector<1x128xf32>
    %77 = vector.broadcast %76 : vector<1x128xf32> to vector<8x128xf32>
    %78 = arith.mulf %73, %77 : vector<8x128xf32>
    %79 = vector.broadcast %57 : vector<1x128xf32> to vector<8x128xf32>
    %80 = arith.mulf %78, %79 : vector<8x128xf32>
    %81 = vector.broadcast %58 : vector<1x128xf32> to vector<8x128xf32>
    %82 = arith.addf %80, %81 : vector<8x128xf32>
    %cst_32 = arith.constant 0.000000e+00 : f32
    %83 = vector.broadcast %cst_32 : f32 to vector<8x128xf32>
    %84 = arith.maximumf %82, %83 : vector<8x128xf32>
    %c2_33 = arith.constant 2 : index
    %c0_34 = arith.constant 0 : index
    %c0_35 = arith.constant 0 : index
    %85 = vector.load %arg1[%c2_33, %c0_34, %c0_35] : memref<3x128x128xbf16, #tpu.memory_space<vmem>>, vector<1x128x128xbf16>
    %86 = vector.shape_cast %85 : vector<1x128x128xbf16> to vector<128x128xbf16>
    %c4 = arith.constant 4 : index
    %c0_36 = arith.constant 0 : index
    %87 = vector.load %arg2[%c4, %c0_36] : memref<5x128xf32, #tpu.memory_space<vmem>>, vector<1x128xf32>
    %88 = arith.truncf %84 : vector<8x128xf32> to vector<8x128xbf16>
    %cst_37 = arith.constant dense<0.000000e+00> : vector<8x128xf32>
    %89 = tpu.matmul %88, %86, %cst_37 {dimension_numbers = #tpu.dot_dimension_numbers<[1], [0], [0], [1], [0, 0, 1, 1], [], []>} : vector<8x128xbf16>, vector<128x128xbf16>, vector<8x128xf32> -> vector<8x128xf32>
    %90 = vector.broadcast %87 : vector<1x128xf32> to vector<8x128xf32>
    %91 = arith.addf %89, %90 : vector<8x128xf32>
    %92 = math.tanh %91 : vector<8x128xf32>
    %cst_38 = arith.constant 2.000000e+00 : f32
    %93 = vector.broadcast %cst_38 : f32 to vector<8x128xf32>
    %94 = arith.mulf %93, %92 : vector<8x128xf32>
    %c0_39 = arith.constant 0 : index
    %c0_40 = arith.constant 0 : index
    %95 = vector.load %arg3[%c0_39, %c0_40] : memref<8x128xf32, #tpu.memory_space<vmem>>, vector<8x128xf32>
    tpu.vector_store %arg3[%c0_39, %c0_40], %94 {strides = array<i32>} : memref<8x128xf32, #tpu.memory_space<vmem>>, vector<8x128xf32>,
    return
  }
}

</mosaic_0001>

<llo_original>
// kernel: actor_forward.1
$region0: #{actor_forward.1}
  #allocation0 [shape = 'u32[]', space=smem, size = 0x4, offset = 0x4, fixed_abs, tag = 'smem constant byte address 0x4 - core index']
  #allocation1 [shape = 'u32[72,128]{1,0:T(1,128)}', space=vmem, size = 0x9000, scoped, tag = 'internal scratch']
  %s0 = inlined_call_operand.hbm [shape: f32[8,24], index: 0, kind: input, shape index: {}]
  %s1 = inlined_call_operand.hbm [shape: bf16[3,128,128], index: 1, kind: input, shape index: {}]
  %s2 = inlined_call_operand.hbm [shape: f32[5,128], index: 2, kind: input, shape index: {}]
  %s3 = inlined_call_operand.hbm [shape: f32[8,128], index: 3, kind: output, shape index: {}]
  %s4 = sld [smem:[#allocation0]]
  $region34: #{actor_forward.1} parent=0
    _
  %s6 = ssub.s32 1, %s4
  %s7 = scalar_select 0, %s6, %s4
  $region1: #{actor_forward.1} parent=0
    #allocation2 [shape = 'u8[4096]{0}', space=vmem, size = 0x1000, scoped, tag = 'input window, operand 0, single buffered']
    #allocation3 [shape = 's32[1]{0}', space=sflag, size = 0x4, scoped, tag = 'scoped memory for actor_forward.1']
    #allocation4 [shape = 's32[1]{0}', space=sflag, size = 0x4, scoped, tag = 'scoped memory for actor_forward.1']
    #allocation5 [shape = 'u8[98304]{0}', space=vmem, size = 0x18000, scoped, tag = 'input window, operand 1, single buffered']
    #allocation6 [shape = 's32[1]{0}', space=sflag, size = 0x4, scoped, tag = 'scoped memory for actor_forward.1']
    #allocation7 [shape = 'u8[4096]{0}', space=vmem, size = 0x1000, scoped, tag = 'input window, operand 2, single buffered']
    #allocation8 [shape = 'u8[4096]{0}', space=vmem, size = 0x1000, scoped, tag = 'output window, operand 0, single buffered']
    %8 = vsyncpa [#allocation3], 0
    %9 = vsyncpa [#allocation6], 0
    %10 = vsyncpa [#allocation4], 0
    // Predicated region
    $region2: #{actor_forward.1} parent=1 // pred_check
      _
    $region3: #{actor_forward.1} parent=1 // pred_check_branch
      %12 = sbr.rel (0) target = $region5
    $region4: #{actor_forward.1} parent=1 // pred_region
      %14 = vsyncadd [#allocation3], 0
      %s16 = sshll.u32 %s0, 4
      %s17 = int_to_ptr.hbm [resolvable:$true] %s16
      %s18 = sshll.u32 [#allocation2], 4
      %s19 = int_to_ptr.vmem [resolvable:$true] %s18
      %21 = dma.hbm_to_vmem [thread:$0]  %s17, 128, %s19, [#allocation3]
    $region5: #{actor_forward.1} parent=1 // pred_fallthru
      _
    // Predicated region
    $region6: #{actor_forward.1} parent=1 // pred_check
      _
    $region7: #{actor_forward.1} parent=1 // pred_check_branch
      %23 = sbr.rel (0) target = $region9
    $region8: #{actor_forward.1} parent=1 // pred_region
      %25 = vsyncadd [#allocation6], 0
      %s26 = sshll.u32 %s1, 4
      %s27 = int_to_ptr.hbm [resolvable:$true] %s26
      %s28 = sshll.u32 [#allocation5], 4
      %s29 = int_to_ptr.vmem [resolvable:$true] %s28
      %34 = dma.hbm_to_vmem [thread:$0]  %s27, 3072, %s29, [#allocation6], 64, 64, 4
    $region9: #{actor_forward.1} parent=1 // pred_fallthru
      _
    // Predicated region
    $region10: #{actor_forward.1} parent=1 // pred_check
      _
    $region11: #{actor_forward.1} parent=1 // pred_check_branch
      %36 = sbr.rel (0) target = $region13
    $region12: #{actor_forward.1} parent=1 // pred_region
      %38 = vsyncadd [#allocation6], 0
      %s40 = sshll.u32 %s2, 4
      %s41 = int_to_ptr.hbm [resolvable:$true] %s40
      %s42 = sshll.u32 [#allocation7], 4
      %s43 = int_to_ptr.vmem [resolvable:$true] %s42
      %45 = dma.hbm_to_vmem [thread:$0]  %s41, 128, %s43, [#allocation6]
    $region13: #{actor_forward.1} parent=1 // pred_fallthru
      _
    // Predicated region
    $region14: #{actor_forward.1} parent=1 // pred_check
      _
    $region15: #{actor_forward.1} parent=1 // pred_check_branch
      %47 = sbr.rel (0) target = $region17
    $region16: #{actor_forward.1} parent=1 // pred_region
      %49 = dma.done [#allocation3], 128
    $region17: #{actor_forward.1} parent=1 // pred_fallthru
      _
    // Predicated region
    $region18: #{actor_forward.1} parent=1 // pred_check
      _
    $region19: #{actor_forward.1} parent=1 // pred_check_branch
      %51 = sbr.rel (0) target = $region21
    $region20: #{actor_forward.1} parent=1 // pred_region
      %53 = dma.done [#allocation6], 3072
    $region21: #{actor_forward.1} parent=1 // pred_fallthru
      _
    // Predicated region
    $region22: #{actor_forward.1} parent=1 // pred_check
      _
    $region23: #{actor_forward.1} parent=1 // pred_check_branch
      %55 = sbr.rel (0) target = $region25
    $region24: #{actor_forward.1} parent=1 // pred_region
      %57 = dma.done [#allocation6], 128
    $region25: #{actor_forward.1} parent=1 // pred_fallthru
      _
    %v59 = vld [vmem:[#allocation2] sm:$0xff]
    %vm60 = vcmask 195584
    %v61 = vsel %vm60, %v59, 0.0
    %v62 = vrot.slane %v61, 4
    %v63 = vadd.f32 %v61, %v62
    %v64 = vrot.slane %v63, 2
    %v65 = vadd.f32 %v63, %v64
    %v66 = vrot.slane %v65, 1
    %v67 = vadd.f32 %v65, %v66
    %v68 = vmul.f32 %v59, %v59
    %v69 = vsel %vm60, %v68, 0.0
    %v70 = vrot.slane %v69, 4
    %v71 = vadd.f32 %v69, %v70
    %v72 = vrot.slane %v71, 2
    %v73 = vadd.f32 %v71, %v72
    %v74 = vrot.slane %v73, 1
    %v75 = vadd.f32 %v73, %v74
    %v76 = vmul.f32 %v67, 0.125
    %v77 = vmul.f32 %v75, 0.125
    %v78 = vmul.f32 %v76, %v76
    %v79 = vsub.f32 %v77, %v78
    %v80 = vmax.f32 %v79, 0.0
    %v81 = vsub.f32 %v59, %v76
    %v82 = vadd.f32 %v80, 1e-05
    %v83 = vrsqrt.pop %v82
    %v84 = vmul.f32 %v83, %v82
    %v85 = vmul.f32 %v84, %v83
    %v86 = vmul.f32 0.5, %v85
    %v87 = vsub.f32 1.5, %v86
    %v88 = vmul.f32 %v83, %v87
    %vm89 = vweird.f32 %v82
    %vm90 = vweird.f32 %v83
    %vm91 = vmor %vm89, %vm90
    %v92 = vsel %vm91, %v83, %v88
    %v93 = vmul.f32 %v81, %v92
    %v94 = vld [vmem:[#allocation5] sm:$0xf]
    %v95 = vld [vmem:[#allocation5 + $0x4] sm:$0xf]
    %v96 = vld [vmem:[#allocation5 + $0x8] sm:$0xf]
    %v97 = vpack.c.bf16 %v93, %v93
    %v101 = vunpack.c.l.b16 %v94
    %v102 = vunpack.c.l.b16 %v95
    %v103 = vunpack.c.l.b16 %v96
    %v104 = vpack.c.b16 %v102, %v101
    %v105 = vpack.c.b16 %v103, %v103
    %v108 = vsel %vm60, %v97, 0
    %vm110 = vcmask 1043456
    %v112 = vsel %vm110, %v105, 0
    %114 = vmatpush.bf16.msra.mxu0 0
    %115 = vmatpush.bf16.msra.mxu0 0
    %116 = vmatpush.bf16.msra.mxu0 0
    %117 = vmatpush.bf16.msra.mxu0 0
    %118 = vmatpush.bf16.msra.mxu0 0
    %119 = vmatpush.bf16.msra.mxu0 0
    %120 = vmatpush.bf16.msra.mxu0 %v112
    %121 = vmatpush.bf16.msra.mxu0 %v104
    %122 = vmatmul.bf16.gmra.mxu0 %v108
    %v123 = vpop.f32.mrf.mxu0
    %v124 = vadd.f32 0.0, %v123
    %v125 = vpop.f32.mrf.mxu0
    %126 = vdwg.mxu0
    %v127 = vld [vmem:[#allocation7] sm:$0x1]
    %v128 = vld [vmem:[#allocation7 + $0x1] sm:$0x1]
    %v129 = vrot.slane %v124, 4
    %v130 = vadd.f32 %v124, %v129
    %v131 = vrot.slane %v130, 2
    %v132 = vadd.f32 %v130, %v131
    %v133 = vrot.slane %v132, 1
    %v134 = vadd.f32 %v132, %v133
    %v135 = vmul.f32 %v124, %v124
    %v136 = vrot.slane %v135, 4
    %v137 = vadd.f32 %v135, %v136
    %v138 = vrot.slane %v137, 2
    %v139 = vadd.f32 %v137, %v138
    %v140 = vrot.slane %v139, 1
    %v141 = vadd.f32 %v139, %v140
    %v142 = vmul.f32 %v134, 0.125
    %v143 = vmul.f32 %v141, 0.125
    %v144 = vmul.f32 %v142, %v142
    %v145 = vsub.f32 %v143, %v144
    %v146 = vmax.f32 %v145, 0.0
    %v147 = vsub.f32 %v124, %v142
    %v148 = vadd.f32 %v146, 1e-05
    %v149 = vrsqrt.pop %v148
    %v150 = vmul.f32 %v149, %v148
    %v151 = vmul.f32 %v150, %v149
    %v152 = vmul.f32 0.5, %v151
    %v153 = vsub.f32 1.5, %v152
    %v154 = vmul.f32 %v149, %v153
    %vm155 = vweird.f32 %v148
    %vm156 = vweird.f32 %v149
    %vm157 = vmor %vm155, %vm156
    %v158 = vsel %vm157, %v149, %v154
    %v159 = vmul.f32 %v147, %v158
    %v160 = vperm.slane %v127, 0
    %v161 = vmul.f32 %v159, %v160
    %v162 = vperm.slane %v128, 0
    %v163 = vadd.f32 %v161, %v162
    %v164 = vmax.f32 %v163, 0.0
    %s165 = scalar_lea.vmem [#allocation5], 64
    %v166 = vld [vmem:[%s165] sm:$0xf]
    %v167 = vld [vmem:[%s165 + $0x4] sm:$0xf]
    %v168 = vld [vmem:[%s165 + $0x8] sm:$0xf]
    %v169 = vld [vmem:[%s165 + $0xc] sm:$0xf]
    %v170 = vld [vmem:[%s165 + $0x10] sm:$0xf]
    %v171 = vld [vmem:[%s165 + $0x14] sm:$0xf]
    %v172 = vld [vmem:[%s165 + $0x18] sm:$0xf]
    %v173 = vld [vmem:[%s165 + $0x1c] sm:$0xf]
    %v174 = vld [vmem:[%s165 + $0x20] sm:$0xf]
    %v175 = vld [vmem:[%s165 + $0x24] sm:$0xf]
    %v176 = vld [vmem:[%s165 + $0x28] sm:$0xf]
    %v177 = vld [vmem:[%s165 + $0x2c] sm:$0xf]
    %v178 = vld [vmem:[%s165 + $0x30] sm:$0xf]
    %v179 = vld [vmem:[%s165 + $0x34] sm:$0xf]
    %v180 = vld [vmem:[%s165 + $0x38] sm:$0xf]
    %v181 = vld [vmem:[%s165 + $0x3c] sm:$0xf]
    %v182 = vpack.c.bf16 %v164, %v164
    %v199 = vunpack.c.l.b16 %v166
    %v200 = vunpack.c.l.b16 %v167
    %v201 = vunpack.c.l.b16 %v168
    %v202 = vunpack.c.l.b16 %v169
    %v203 = vunpack.c.l.b16 %v170
    %v204 = vunpack.c.l.b16 %v171
    %v205 = vunpack.c.l.b16 %v172
    %v206 = vunpack.c.l.b16 %v173
    %v207 = vunpack.c.l.b16 %v174
    %v208 = vunpack.c.l.b16 %v175
    %v209 = vunpack.c.l.b16 %v176
    %v210 = vunpack.c.l.b16 %v177
    %v211 = vunpack.c.l.b16 %v178
    %v212 = vunpack.c.l.b16 %v179
    %v213 = vunpack.c.l.b16 %v180
    %v214 = vunpack.c.l.b16 %v181
    %v215 = vpack.c.b16 %v200, %v199
    %v216 = vpack.c.b16 %v202, %v201
    %v217 = vpack.c.b16 %v204, %v203
    %v218 = vpack.c.b16 %v206, %v205
    %v219 = vpack.c.b16 %v208, %v207
    %v220 = vpack.c.b16 %v210, %v209
    %v221 = vpack.c.b16 %v212, %v211
    %v222 = vpack.c.b16 %v214, %v213
    %231 = vmatpush.bf16.msra.mxu0 %v222
    %232 = vmatpush.bf16.msra.mxu0 %v221
    %233 = vmatpush.bf16.msra.mxu0 %v220
    %234 = vmatpush.bf16.msra.mxu0 %v219
    %235 = vmatpush.bf16.msra.mxu0 %v218
    %236 = vmatpush.bf16.msra.mxu0 %v217
    %237 = vmatpush.bf16.msra.mxu0 %v216
    %238 = vmatpush.bf16.msra.mxu0 %v215
    %239 = vmatmul.bf16.gmra.mxu0 %v182
    %v240 = vpop.f32.mrf.mxu0
    %v241 = vadd.f32 0.0, %v240
    %v242 = vpop.f32.mrf.mxu0
    %243 = vdwg.mxu0
    %v244 = vld [vmem:[#allocation7 + $0x2] sm:$0x1]
    %v245 = vld [vmem:[#allocation7 + $0x3] sm:$0x1]
    %v246 = vrot.slane %v241, 4
    %v247 = vadd.f32 %v241, %v246
    %v248 = vrot.slane %v247, 2
    %v249 = vadd.f32 %v247, %v248
    %v250 = vrot.slane %v249, 1
    %v251 = vadd.f32 %v249, %v250
    %v252 = vmul.f32 %v241, %v241
    %v253 = vrot.slane %v252, 4
    %v254 = vadd.f32 %v252, %v253
    %v255 = vrot.slane %v254, 2
    %v256 = vadd.f32 %v254, %v255
    %v257 = vrot.slane %v256, 1
    %v258 = vadd.f32 %v256, %v257
    %v259 = vmul.f32 %v251, 0.125
    %v260 = vmul.f32 %v258, 0.125
    %v261 = vmul.f32 %v259, %v259
    %v262 = vsub.f32 %v260, %v261
    %v263 = vmax.f32 %v262, 0.0
    %v264 = vsub.f32 %v241, %v259
    %v265 = vadd.f32 %v263, 1e-05
    %v266 = vrsqrt.pop %v265
    %v267 = vmul.f32 %v266, %v265
    %v268 = vmul.f32 %v267, %v266
    %v269 = vmul.f32 0.5, %v268
    %v270 = vsub.f32 1.5, %v269
    %v271 = vmul.f32 %v266, %v270
    %vm272 = vweird.f32 %v265
    %vm273 = vweird.f32 %v266
    %vm274 = vmor %vm272, %vm273
    %v275 = vsel %vm274, %v266, %v271
    %v276 = vmul.f32 %v264, %v275
    %v277 = vperm.slane %v244, 0
    %v278 = vmul.f32 %v276, %v277
    %v279 = vperm.slane %v245, 0
    %v280 = vadd.f32 %v278, %v279
    %v281 = vmax.f32 %v280, 0.0
    %s282 = scalar_lea.vmem [#allocation5], 128
    %v283 = vld [vmem:[%s282] sm:$0xf]
    %v284 = vld [vmem:[%s282 + $0x4] sm:$0xf]
    %v285 = vld [vmem:[%s282 + $0x8] sm:$0xf]
    %v286 = vld [vmem:[%s282 + $0xc] sm:$0xf]
    %v287 = vld [vmem:[%s282 + $0x10] sm:$0xf]
    %v288 = vld [vmem:[%s282 + $0x14] sm:$0xf]
    %v289 = vld [vmem:[%s282 + $0x18] sm:$0xf]
    %v290 = vld [vmem:[%s282 + $0x1c] sm:$0xf]
    %v291 = vld [vmem:[%s282 + $0x20] sm:$0xf]
    %v292 = vld [vmem:[%s282 + $0x24] sm:$0xf]
    %v293 = vld [vmem:[%s282 + $0x28] sm:$0xf]
    %v294 = vld [vmem:[%s282 + $0x2c] sm:$0xf]
    %v295 = vld [vmem:[%s282 + $0x30] sm:$0xf]
    %v296 = vld [vmem:[%s282 + $0x34] sm:$0xf]
    %v297 = vld [vmem:[%s282 + $0x38] sm:$0xf]
    %v298 = vld [vmem:[%s282 + $0x3c] sm:$0xf]
    %v299 = vld [vmem:[#allocation7 + $0x4] sm:$0x1]
    %v300 = vpack.c.bf16 %v281, %v281
    %v301 = vperm.slane %v299, 0
    %v318 = vunpack.c.l.b16 %v283
    %v319 = vunpack.c.l.b16 %v284
    %v320 = vunpack.c.l.b16 %v285
    %v321 = vunpack.c.l.b16 %v286
    %v322 = vunpack.c.l.b16 %v287
    %v323 = vunpack.c.l.b16 %v288
    %v324 = vunpack.c.l.b16 %v289
    %v325 = vunpack.c.l.b16 %v290
    %v326 = vunpack.c.l.b16 %v291
    %v327 = vunpack.c.l.b16 %v292
    %v328 = vunpack.c.l.b16 %v293
    %v329 = vunpack.c.l.b16 %v294
    %v330 = vunpack.c.l.b16 %v295
    %v331 = vunpack.c.l.b16 %v296
    %v332 = vunpack.c.l.b16 %v297
    %v333 = vunpack.c.l.b16 %v298
    %v334 = vpack.c.b16 %v319, %v318
    %v335 = vpack.c.b16 %v321, %v320
    %v336 = vpack.c.b16 %v323, %v322
    %v337 = vpack.c.b16 %v325, %v324
    %v338 = vpack.c.b16 %v327, %v326
    %v339 = vpack.c.b16 %v329, %v328
    %v340 = vpack.c.b16 %v331, %v330
    %v341 = vpack.c.b16 %v333, %v332
    %350 = vmatpush.bf16.msra.mxu0 %v341
    %351 = vmatpush.bf16.msra.mxu0 %v340
    %352 = vmatpush.bf16.msra.mxu0 %v339
    %353 = vmatpush.bf16.msra.mxu0 %v338
    %354 = vmatpush.bf16.msra.mxu0 %v337
    %355 = vmatpush.bf16.msra.mxu0 %v336
    %356 = vmatpush.bf16.msra.mxu0 %v335
    %357 = vmatpush.bf16.msra.mxu0 %v334
    %358 = vmatmul.bf16.gmra.mxu0 %v300
    %v359 = vpop.f32.mrf.mxu0
    %v360 = vadd.f32 %v301, %v359
    %v361 = vpop.f32.mrf.mxu0
    %362 = vdwg.mxu0
    %v363 = vtanh.pop %v360
    %v364 = vmul.f32 %v363, 2.0
    %365 = vst [vmem:[#allocation8] sm:$0xff] %v364
    // Predicated region
    $region26: #{actor_forward.1} parent=1 // pred_check
      _
    $region27: #{actor_forward.1} parent=1 // pred_check_branch
      %367 = sbr.rel (0) target = $region29
    $region28: #{actor_forward.1} parent=1 // pred_region
      %369 = vsyncadd [#allocation4], 0
      %s371 = sshll.u32 [#allocation8], 4
      %s372 = int_to_ptr.vmem [resolvable:$true] %s371
      %s373 = sshll.u32 %s3, 4
      %s374 = int_to_ptr.hbm [resolvable:$true] %s373
      %376 = dma.vmem_to_hbm [thread:$0]  %s372, 128, %s374, [#allocation4]
    $region29: #{actor_forward.1} parent=1 // pred_fallthru
      _
    // Predicated region
    $region30: #{actor_forward.1} parent=1 // pred_check
      _
    $region31: #{actor_forward.1} parent=1 // pred_check_branch
      %378 = sbr.rel (0) target = $region33
    $region32: #{actor_forward.1} parent=1 // pred_region
      %380 = dma.done [#allocation4], 128
    $region33: #{actor_forward.1} parent=1 // pred_fallthru
      _
    %381 = vsyncpa [#allocation3], 1
    %382 = vsyncpa [#allocation6], 1
    %383 = vsyncpa [#allocation4], 1

</llo_original>
